<compile_context>
chip_gen: v7x
topology: tpu7x:2x2x1
jax: 0.10.0
libtpu: 0.0.40
codegen_flags: <defaults>
</compile_context>

<pallas_src>
import jax
import jax.numpy as jnp
from jax.experimental import pallas as pl
from jax.experimental.pallas import tpu as pltpu

_LANE = 128
_SUBLANE = 8
_TARGET_BLOCK_ELEMS = 1 << 20          # ~4 MiB f32 / ~2 MiB bf16 per block buffer
_VMEM_LIMIT_BYTES = 32 * 1024 * 1024   # explicit scoped-VMEM budget (safe v5e..v7x)
_MIN_SPLIT_BYTES = 1 * 1024 * 1024     # arrays >= this get >=2 grid steps (v7x megacore)


def _round_up(x: int, m: int) -> int:
    return ((x + m - 1) // m) * m


def _round_down(x: int, m: int) -> int:
    return (x // m) * m


def _cosine_kernel(x_ref, o_ref):
    # Elementwise cosine on the VMEM tile. Compute in f32: the cos lowering is a
    # range reduction + polynomial on the VPU, and v5e has no bf16 VALUs, so a
    # single upcast + final downcast is the portable choice.
    # TODO(synk): bf16-native polynomial path for v6e/v7x (halves VALU ops and
    # restores the HBM roofline at 3.2 TB/s) needs accuracy validation of bf16
    # range reduction for large |x|; keeping f32 compute for correctness.
    x = x_ref[...].astype(jnp.float32)
    o_ref[...] = jnp.cos(x).astype(o_ref.dtype)


def _cos_2d(x2d: jax.Array) -> jax.Array:
    """cos over a 2-D array, tiled so every block is (8k,128m) or full-extent."""
    rows, cols = x2d.shape
    itemsize = jnp.dtype(x2d.dtype).itemsize
    # Native packed sublane tile: 8 rows for 32-bit, 16 for 16-bit dtypes.
    row_pack = _SUBLANE * max(1, 4 // itemsize)
    cols_eff = _round_up(cols, _LANE)   # lane-padded width used for VMEM sizing

    # --- column block: keep the full extent unless even row_pack rows overflow ---
    if cols_eff * row_pack <= _TARGET_BLOCK_ELEMS:
        bc = cols                                          # full extent (any width legal)
    else:
        bc = max(_LANE, _round_down(_TARGET_BLOCK_ELEMS // row_pack, _LANE))
    bc_eff = _round_up(bc, _LANE)

    # --- row block: as many rows as fit the element budget, packed-tile aligned ---
    br_budget = _TARGET_BLOCK_ELEMS // bc_eff
    if br_budget >= rows:
        br = rows                                          # whole array in one row block
    else:
        br = min(rows, max(row_pack, _round_down(br_budget, row_pack)))

    # --- megacore: non-tiny single-block arrays get >= 2 grid steps (v7x 2 TCs) ---
    total_bytes = rows * cols * itemsize
    if (br >= rows and bc >= cols
            and total_bytes >= _MIN_SPLIT_BYTES and rows >= 2 * row_pack):
        br = _round_up(pl.cdiv(rows, 2), row_pack)

    # --- prefer a row block dividing rows (unmasked stores) at equal step count ---
    if br < rows and rows % br != 0:
        steps = pl.cdiv(rows, br)
        cand = br - row_pack
        while cand >= row_pack and pl.cdiv(rows, cand) == steps:
            if rows % cand == 0:
                br = cand
                break
            cand -= row_pack

    grid = (pl.cdiv(rows, br), pl.cdiv(cols, bc))
    n = rows * cols
    cost = pl.CostEstimate(
        flops=18 * n,            # range reduction + polynomial on the VPU
        transcendentals=0,       # cos does not use the EUP
        bytes_accessed=2 * n * itemsize,
    )

    return pl.pallas_call(
        _cosine_kernel,
        out_shape=jax.ShapeDtypeStruct((rows, cols), x2d.dtype),
        grid=grid,
        in_specs=[pl.BlockSpec((br, bc), lambda i, j: (i, j))],
        out_specs=pl.BlockSpec((br, bc), lambda i, j: (i, j)),
        compiler_params=pltpu.CompilerParams(
            dimension_semantics=("parallel", "parallel"),
            vmem_limit_bytes=_VMEM_LIMIT_BYTES,
        ),
        cost_estimate=cost,
    )(x2d)


def cosine(x: jax.Array) -> jax.Array:
    """Elementwise cos(x) via a Pallas TPU kernel (matches torch.cos semantics)."""
    if x.size == 0 or x.ndim == 0 or not jnp.issubdtype(x.dtype, jnp.floating):
        # Degenerate shapes / integer inputs: let XLA handle it (torch.cos also
        # promotes integer inputs to float).
        return jnp.cos(x)

    shape = x.shape
    if x.ndim == 1:
        n = shape[0]
        rows, cols = (n // _LANE, _LANE) if n % _LANE == 0 else (1, n)
    else:
        cols = shape[-1]
        rows = x.size // cols

    # Collapsing leading dims of a contiguous array is a free (no-copy) reshape.
    y2d = _cos_2d(x.reshape(rows, cols))
    return y2d.reshape(shape)


if __name__ == "__main__":
    key = jax.random.PRNGKey(0)
    k1, k2, k3, k4 = jax.random.split(key, 4)

    # Small batch of feature vectors, consistent with DARTS usage.
    x = jax.random.normal(k1, (8, 32), dtype=jnp.float32)
    y = jax.block_until_ready(cosine(x))
    assert y.shape == x.shape and y.dtype == x.dtype
    assert jnp.allclose(y, jnp.cos(x), atol=1e-5, rtol=1e-5)

    # 4-D, unaligned feature dim: exercises the no-pad masked-edge path.
    x_odd = jax.random.normal(k2, (2, 4, 16, 16), dtype=jnp.float32) * 3.0
    y_odd = jax.block_until_ready(cosine(x_odd))
    assert y_odd.shape == x_odd.shape
    assert jnp.allclose(y_odd, jnp.cos(x_odd), atol=1e-5, rtol=1e-5)

    # Ragged 1-D input.
    x_1d = jax.random.normal(k3, (1000,), dtype=jnp.float32) * 5.0
    y_1d = jax.block_until_ready(cosine(x_1d))
    assert jnp.allclose(y_1d, jnp.cos(x_1d), atol=1e-5, rtol=1e-5)

    # bf16 input (16-row packed sublane alignment path).
    x_bf16 = jax.random.normal(k4, (64, 96)).astype(jnp.bfloat16)
    y_bf16 = jax.block_until_ready(cosine(x_bf16))
    assert y_bf16.dtype == jnp.bfloat16
    assert jnp.allclose(y_bf16.astype(jnp.float32),
                        jnp.cos(x_bf16.astype(jnp.float32)),
                        atol=1e-2, rtol=1e-2)

    print("KERNEL_OK")
</pallas_src>

<mosaic_0001>
module attributes {stable_mosaic.version = 11 : i64} {
  func.func @_cosine_kernel(%arg0: i32, %arg1: i32, %arg2: memref<8x32xf32, #tpu.memory_space<vmem>>, %arg3: memref<8x32xf32, #tpu.memory_space<vmem>>) attributes {dimension_semantics = [#tpu.dimension_semantics<parallel>, #tpu.dimension_semantics<parallel>], iteration_bounds = array<i64: 1, 1>, scalar_prefetch = 0 : i64, scratch_operands = 0 : i64, tpu.core_type = #tpu.core_type<tc>, window_params = [{transform_indices = @transform_0, window_bounds = array<i64: 8, 32>}, {transform_indices = @transform_1, window_bounds = array<i64: 8, 32>}]} {
    %c0 = arith.constant 0 : index
    %c0_0 = arith.constant 0 : index
    %0 = vector.load %arg2[%c0, %c0_0] : memref<8x32xf32, #tpu.memory_space<vmem>>, vector<8x32xf32>
    %1 = math.cos %0 : vector<8x32xf32>
    %c0_1 = arith.constant 0 : index
    %c0_2 = arith.constant 0 : index
    %2 = vector.load %arg3[%c0_1, %c0_2] : memref<8x32xf32, #tpu.memory_space<vmem>>, vector<8x32xf32>
    tpu.vector_store %arg3[%c0_1, %c0_2], %1 {strides = array<i32>} : memref<8x32xf32, #tpu.memory_space<vmem>>, vector<8x32xf32>,
    return
  }
  func.func @transform_0(%arg0: i32, %arg1: i32) -> (i32, i32) {
    %c0_i32 = arith.constant 0 : i32
    return %arg0, %arg1 : i32, i32
  }
  func.func @transform_1(%arg0: i32, %arg1: i32) -> (i32, i32) {
    %c0_i32 = arith.constant 0 : i32
    return %arg0, %arg1 : i32, i32
  }
}

</mosaic_0001>

<llo_original>
// kernel: tpu_custom_call.1
$region0: #{tpu_custom_call.1}
  #allocation0 [shape = 'u32[]', space=smem, size = 0x4, offset = 0x4, fixed_abs, tag = 'smem constant byte address 0x4 - core index']
  #allocation1 [shape = 'u32[144,128]{1,0:T(1,128)}', space=vmem, size = 0x12000, scoped, tag = 'internal scratch']
  %s0 = inlined_call_operand.hbm [shape: f32[8,32], index: 0, kind: input, shape index: {}]
  %s1 = inlined_call_operand.hbm [shape: f32[8,32], index: 1, kind: output, shape index: {}]
  %s2 = sld [smem:[#allocation0]]
  $region18: #{tpu_custom_call.1} parent=0
    _
  %s4 = ssub.s32 1, %s2
  %s5 = scalar_select 0, %s4, %s2
  $region1: #{tpu_custom_call.1} parent=0
    #allocation2 [shape = 'u8[4096]{0}', space=vmem, size = 0x1000, scoped, tag = 'input window, operand 0, single buffered']
    #allocation3 [shape = 's32[1]{0}', space=sflag, size = 0x4, scoped, tag = 'scoped memory for tpu_custom_call.1']
    #allocation4 [shape = 's32[1]{0}', space=sflag, size = 0x4, scoped, tag = 'scoped memory for tpu_custom_call.1']
    #allocation5 [shape = 'u8[4096]{0}', space=vmem, size = 0x1000, scoped, tag = 'output window, operand 0, single buffered']
    %6 = vsyncpa [#allocation3], 0
    %7 = vsyncpa [#allocation4], 0
    // Predicated region
    $region2: #{tpu_custom_call.1} parent=1 // pred_check
      _
    $region3: #{tpu_custom_call.1} parent=1 // pred_check_branch
      %9 = sbr.rel (0) target = $region5
    $region4: #{tpu_custom_call.1} parent=1 // pred_region
      %s11 = ssub.s32 128, 128
      %12 = vsyncadd [#allocation3], %s11
      %s14 = sshll.u32 [#allocation2], 4
      %s15 = int_to_ptr.vmem [resolvable:$true] %s14
      %17 = dma.hbm_to_vmem [thread:$0]  %s0, 128, %s15, [#allocation3]
    $region5: #{tpu_custom_call.1} parent=1 // pred_fallthru
      _
    // Predicated region
    $region6: #{tpu_custom_call.1} parent=1 // pred_check
      _
    $region7: #{tpu_custom_call.1} parent=1 // pred_check_branch
      %19 = sbr.rel (0) target = $region9
    $region8: #{tpu_custom_call.1} parent=1 // pred_region
      %20 = dma.done [#allocation3], 128
    $region9: #{tpu_custom_call.1} parent=1 // pred_fallthru
      _
    %v21 = vld [vmem:[#allocation2] sm:$0xff]
    %v22 = vand.u32 2147483647, %v21
    %vm23 = vcmp.le.f32.partialorder %v22, 0.7853982
    %vm24 = vcmp.lt.s32.totalorder %v21, 0
    %v25 = vand.u32 %v21, 2139095040
    %v26 = vshrl.u32 %v25, 23
    %v27 = vsub.s32 %v26, 127
    %v28 = vand.u32 2147483647, %v21
    %v29 = vand.u32 %v28, 8388607
    %v30 = vor.u32 %v29, 8388608
    %v31 = vsub.s32 0, %v30
    %v32 = vadd.s32 %v27, 1
    %vm33 = vcmp.gt.s32.totalorder %v32, 0
    %v34 = vsel %vm33, %v32, 0
    %v35 = vshrl.u32 %v34, 5
    %v36 = vand.u32 %v34, 31
    %v37 = vsub.s32 32, %v36
    %v38 = vshrl.u32 683565275, %v37
    %v39 = vshll.u32 683565275, %v36
    %v40 = vshrl.u32 2475754826, %v37
    %v41 = vor.u32 %v39, %v40
    %v42 = vshll.u32 2475754826, %v36
    %v43 = vshrl.u32 2131351028, %v37
    %v44 = vor.u32 %v42, %v43
    %v45 = vshll.u32 2131351028, %v36
    %v46 = vshrl.u32 2102212464, %v37
    %v47 = vor.u32 %v45, %v46
    %v48 = vshll.u32 2102212464, %v36
    %v49 = vshrl.u32 920167782, %v37
    %v50 = vor.u32 %v48, %v49
    %v51 = vshll.u32 920167782, %v36
    %v52 = vshrl.u32 1326507024, %v37
    %v53 = vor.u32 %v51, %v52
    %vm54 = vcmp.lt.s32.totalorder %v35, 1
    %vm55 = vcmp.lt.s32.totalorder %v35, 2
    %vm56 = vcmp.lt.s32.totalorder %v35, 3
    %vm57 = vcmp.lt.s32.totalorder %v35, 4
    %v58 = vsel %vm54, %v38, %v41
    %v59 = vsel %vm57, %v47, 2102212464
    %v60 = vsel %vm56, %v44, %v59
    %v61 = vsel %vm55, %v58, %v60
    %v62 = vsel %vm54, %v41, %v44
    %v63 = vsel %vm57, %v50, 920167782
    %v64 = vsel %vm56, %v47, %v63
    %v65 = vsel %vm55, %v62, %v64
    %v66 = vsel %vm54, %v44, %v47
    %v67 = vsel %vm57, %v53, 1326507024
    %v68 = vsel %vm56, %v50, %v67
    %v69 = vsel %vm55, %v66, %v68
    %v70 = vshll.u32 %v30, 8
    %v71 = vmul.u32.u64.compose %v70, %v69
    %v72 = vextract.low.u32 %v71
    %v73 = vextract.high.u32 %v71
    %v74 = vmul.u32.u64.compose %v70, %v65
    %v75 = vextract.low.u32 %v74
    %v76 = vextract.high.u32 %v74
    %v77 = vmul.u32 %v70, %v61
    %v78 = vadd.s32 %v73, %v75
    %vm79 = vc.u32 %v73, %v75
    %v80 = vadd.s32 %v76, 1
    %v81 = vsel %vm79, %v80, %v76
    %v82 = vadd.s32 %v77, %v81
    %v83 = vadd.s32 %v82, 536870912
    %v84 = vshrl.u32 %v83, 30
    %v85 = vshll.u32 %v84, 30
    %v86 = vsub.s32 %v82, %v85
    %vm87 = vcmp.lt.s32.totalorder %v86, 0
    %v88 = vsub.s32 0, %v86
    %v89 = vsel %vm87, %v88, %v86
    %v90 = vclz %v89
    %v91 = vsub.s32 %v90, 2
    %vm92 = vcmp.gt.s32.totalorder 0, %v91
    %v93 = vsel %vm92, 0, %v91
    %v94 = vsub.s32 32, %v93
    %v95 = vshll.u32 %v86, %v93
    %v96 = vshrl.u32 %v78, %v94
    %v97 = vor.u32 %v95, %v96
    %v98 = vsub.s32 4294967266, %v93
    %v99 = vadd.s32 %v98, 127
    %v100 = vshll.u32 %v99, 23
    %v101 = vor.u32 4788187, %v100
    %v102 = vand.u32 2147483647, %v101
    %v104 = vcvt.s32.f32 %v97
    %v105 = vmul.f32 %v104, %v102
    %v106 = vxor.u32 %v105, 2147483648
    %v107 = vsel %vm24, %v106, %v105
    %v108 = vsub.s32 4, %v84
    %v109 = vsel %vm24, %v108, %v84
    %v110 = vsel %vm23, %v21, %v107
    %v111 = vsel %vm23, 0, %v109
    %v112 = vcosq.f32.pop %v110
    %v113 = vsinq.f32.pop %v110
    %vm114 = vweird.f32 %v21
    %v115 = vand.u32 %v111, 3
    %vm116 = vcmp.lt.s32.totalorder %v115, 2
    %vm117 = vcmp.eq.s32.totalorder %v115, 0
    %v118 = vxor.u32 %v113, 2147483648
    %v119 = vsel %vm117, %v112, %v118
    %vm120 = vcmp.eq.s32.totalorder %v115, 2
    %v121 = vxor.u32 %v112, 2147483648
    %v122 = vsel %vm120, %v121, %v113
    %v123 = vsel %vm116, %v119, %v122
    %v124 = vsel %vm114, nan, %v123
    %vm125 = vcmask 261120
    %126 = vst.msk [vmem:[#allocation5] sm:$0xff] %vm125, %v124
    // Predicated region
    $region10: #{tpu_custom_call.1} parent=1 // pred_check
      _
    $region11: #{tpu_custom_call.1} parent=1 // pred_check_branch
      %128 = sbr.rel (0) target = $region13
    $region12: #{tpu_custom_call.1} parent=1 // pred_region
      %s130 = ssub.s32 128, 128
      %131 = vsyncadd [#allocation4], %s130
      %s133 = sshll.u32 [#allocation5], 4
      %s134 = int_to_ptr.vmem [resolvable:$true] %s133
      %136 = dma.vmem_to_hbm [thread:$0]  %s134, 128, %s1, [#allocation4]
    $region13: #{tpu_custom_call.1} parent=1 // pred_fallthru
      _
    // Predicated region
    $region14: #{tpu_custom_call.1} parent=1 // pred_check
      _
    $region15: #{tpu_custom_call.1} parent=1 // pred_check_branch
      %138 = sbr.rel (0) target = $region17
    $region16: #{tpu_custom_call.1} parent=1 // pred_region
      %139 = dma.done [#allocation4], 128
    $region17: #{tpu_custom_call.1} parent=1 // pred_fallthru
      _
    %140 = vsyncpa [#allocation3], 1
    %141 = vsyncpa [#allocation4], 1

</llo_original>
